<compile_context>
chip_gen: v7x
topology: tpu7x:2x2x1
jax: 0.10.0
libtpu: 0.0.40
codegen_flags: <defaults>
</compile_context>

<pallas_src>
import jax
import jax.numpy as jnp
from jax import lax
from jax.experimental import pallas as pl
from jax.experimental.pallas import tpu as pltpu


def _round_up(x, m):
    return (x + m - 1) // m * m


def _cdiv(a, b):
    return -(-a // b)


def maple_critic_kernel(vh_ref, oa_ref,
                        w0_ref, b0_ref,
                        w1h_ref, w1oa_ref, b1_ref,
                        w2_ref, b2_ref,
                        w3t_ref, b3_ref,
                        out_ref):
    # mlp: Linear(lstm_hidden_unit, hidden_sizes[0]) + Tanh
    h = jnp.tanh(
        jnp.dot(vh_ref[...], w0_ref[...], preferred_element_type=jnp.float32)
        + b0_ref[...]
    )
    # vfs[0]: Linear(hidden + obs_dim + action_dim, 256) + ReLU
    # concat replaced by the equivalent sum of two partial matmuls:
    #   [h, obs, act] @ W1 == h @ W1_h + [obs, act] @ W1_oa
    y = (jnp.dot(h, w1h_ref[...], preferred_element_type=jnp.float32)
         + jnp.dot(oa_ref[...], w1oa_ref[...], preferred_element_type=jnp.float32)
         + b1_ref[...])
    y = jnp.maximum(y, 0.0)
    # vfs[1]: Linear(256, 256) + ReLU
    y = jnp.maximum(
        jnp.dot(y, w2_ref[...], preferred_element_type=jnp.float32) + b2_ref[...],
        0.0,
    )
    # vfs[2]: Linear(256, 1) computed lane-dense:
    #   (1, v1) contracted with y's feature dim -> (1, tile_m)
    r = lax.dot_general(
        w3t_ref[...], y,
        dimension_numbers=(((1,), (1,)), ((), ())),
        preferred_element_type=jnp.float32,
    ) + b3_ref[...]
    out_ref[...] = r.reshape(out_ref.shape)


def pack_params(params):
    """One-time (non-jitted, per parameter set) preprocessing of the weights."""
    hidden = params["W0"].shape[1]
    W1 = params["W1"]
    return dict(
        W0=params["W0"],
        b0=params["b0"].reshape(1, -1),
        W1_h=W1[:hidden, :],            # rows matching h
        W1_oa=W1[hidden:, :],           # rows matching [obs, actions], in that order
        b1=params["b1"].reshape(1, -1),
        W2=params["W2"],
        b2=params["b2"].reshape(1, -1),
        W3t=params["W3"].reshape(1, -1),  # (v1, 1) -> (1, v1) row
        b3=params["b3"].reshape(1, 1),
    )


# A batch up to this size is processed as a single (untiled) block: no padding
# at all.  Above it we use ~512-row tiles and guarantee >= 2 tiles so that
# dimension_semantics=("parallel",) can shard across v7x's two TensorCores.
_SINGLE_TILE_MAX = 512
_TARGET_TILE = 512


@jax.jit
def maple_critic_forward(value_hidden, actions, obs, packed):
    batch = value_hidden.shape[0]
    if batch == 0:
        return jnp.zeros((0, 1), jnp.float32)

    lstm_dim = value_hidden.shape[1]
    hidden = packed["W1_h"].shape[0]
    v0 = packed["W2"].shape[0]
    v1 = packed["W2"].shape[1]

    # Concat once in the wrapper (order must match torch.cat([h, obs, actions])).
    oa = jnp.concatenate([obs, actions], axis=-1)
    oa_dim = oa.shape[1]

    # --- adaptive batch tiling ---------------------------------------------
    if batch <= _SINGLE_TILE_MAX:
        num_tiles = 1
        tile_m = batch                       # block == full array; no padding
    else:
        rows8 = _round_up(batch, 8)
        num_tiles = max(2, _cdiv(rows8, _TARGET_TILE))
        tile_m = _round_up(_cdiv(rows8, num_tiles), 8)
    padded_b = num_tiles * tile_m

    if padded_b != batch:
        pad = padded_b - batch               # at most a handful of 8-row remainders
        value_hidden = jnp.pad(value_hidden, ((0, pad), (0, 0)))
        oa = jnp.pad(oa, ((0, pad), (0, 0)))

    grid = (num_tiles,)

    inputs = (
        value_hidden, oa,
        packed["W0"], packed["b0"],
        packed["W1_h"], packed["W1_oa"], packed["b1"],
        packed["W2"], packed["b2"],
        packed["W3t"], packed["b3"],
    )

    const = lambda shape: pl.BlockSpec(shape, lambda i: (0, 0))   # VMEM-resident weights
    in_specs = [
        pl.BlockSpec((tile_m, lstm_dim), lambda i: (i, 0)),       # value_hidden tile
        pl.BlockSpec((tile_m, oa_dim), lambda i: (i, 0)),         # [obs, actions] tile
        const((lstm_dim, hidden)),                                # W0
        const((1, hidden)),                                       # b0
        const((hidden, v0)),                                      # W1_h
        const((oa_dim, v0)),                                      # W1_oa
        const((1, v0)),                                           # b1
        const((v0, v1)),                                          # W2
        const((1, v1)),                                           # b2
        const((1, v1)),                                           # W3^T row
        const((1, 1)),                                            # b3
    ]
    # Lane-dense output: one (1, 1, tile_m) block per grid step.
    out_specs = pl.BlockSpec((1, 1, tile_m), lambda i: (i, 0, 0))

    out = pl.pallas_call(
        maple_critic_kernel,
        out_shape=jax.ShapeDtypeStruct((num_tiles, 1, tile_m), jnp.float32),
        grid=grid,
        in_specs=in_specs,
        out_specs=out_specs,
        compiler_params=pltpu.CompilerParams(
            dimension_semantics=("parallel",),
        ),
    )(*inputs)

    # (num_tiles, 1, tile_m) flattens in row-major order to batch order.
    return out.reshape(padded_b, 1)[:batch]


def init_params(key, obs_dim, action_dim,
                hidden_sizes=(16,), value_hidden_sizes=(256, 256),
                lstm_hidden_unit=128):
    """Deterministic PyTorch-style (uniform +/- 1/sqrt(fan_in)) init."""
    def linear(key, fan_in, fan_out):
        kw, kb = jax.random.split(key)
        bound = 1.0 / jnp.sqrt(jnp.float32(fan_in))
        W = jax.random.uniform(kw, (fan_in, fan_out), jnp.float32, -bound, bound)
        b = jax.random.uniform(kb, (fan_out,), jnp.float32, -bound, bound)
        return W, b

    k0, k1, k2, k3 = jax.random.split(key, 4)
    h0 = hidden_sizes[-1]
    v0, v1 = value_hidden_sizes
    W0, b0 = linear(k0, lstm_hidden_unit, hidden_sizes[0])
    W1, b1 = linear(k1, h0 + obs_dim + action_dim, v0)
    W2, b2 = linear(k2, v0, v1)
    W3, b3 = linear(k3, v1, 1)
    return dict(W0=W0, b0=b0, W1=W1, b1=b1, W2=W2, b2=b2, W3=W3, b3=b3)


def reference_forward(value_hidden, actions, obs, params):
    h = jnp.tanh(value_hidden @ params["W0"] + params["b0"])
    x = jnp.concatenate([h, obs, actions], axis=-1)
    y = jnp.maximum(x @ params["W1"] + params["b1"], 0.0)
    y = jnp.maximum(y @ params["W2"] + params["b2"], 0.0)
    return y @ params["W3"] + params["b3"]


if __name__ == "__main__":
    obs_dim = 11
    action_dim = 3
    lstm_hidden_unit = 128

    key = jax.random.PRNGKey(0)
    kp, kdata = jax.random.split(key)
    params = init_params(kp, obs_dim, action_dim,
                         lstm_hidden_unit=lstm_hidden_unit)
    packed = pack_params(params)   # one-time weight preprocessing (hoisted out of jit)

    # batch=8 / 300: single-tile path (no padding);
    # batch=1300: multi-tile path (3 parallel tiles, small tail pad).
    for batch in (8, 300, 1300):
        kv, ka, ko, kdata = jax.random.split(kdata, 4)
        value_hidden = jax.random.normal(kv, (batch, lstm_hidden_unit), jnp.float32)
        actions = jax.random.normal(ka, (batch, action_dim), jnp.float32)
        obs = jax.random.normal(ko, (batch, obs_dim), jnp.float32)

        out = maple_critic_forward(value_hidden, actions, obs, packed)
        out = jax.block_until_ready(out)

        ref = reference_forward(value_hidden, actions, obs, params)
        assert out.shape == (batch, 1)
        assert jnp.allclose(out, ref, atol=1e-4, rtol=1e-4), \
            f"mismatch vs reference at batch={batch}"

    print("KERNEL_OK")
</pallas_src>

<mosaic_0001>
module attributes {stable_mosaic.version = 11 : i64} {
  func.func @maple_critic_kernel(%arg0: i32, %arg1: memref<8x128xf32, #tpu.memory_space<vmem>>, %arg2: memref<8x14xf32, #tpu.memory_space<vmem>>, %arg3: memref<128x16xf32, #tpu.memory_space<vmem>>, %arg4: memref<1x16xf32, #tpu.memory_space<vmem>>, %arg5: memref<16x256xf32, #tpu.memory_space<vmem>>, %arg6: memref<14x256xf32, #tpu.memory_space<vmem>>, %arg7: memref<1x256xf32, #tpu.memory_space<vmem>>, %arg8: memref<256x256xf32, #tpu.memory_space<vmem>>, %arg9: memref<1x256xf32, #tpu.memory_space<vmem>>, %arg10: memref<1x256xf32, #tpu.memory_space<vmem>>, %arg11: memref<1x1xf32, #tpu.memory_space<vmem>>, %arg12: memref<1x1x8xf32, #tpu.memory_space<vmem>>) attributes {dimension_semantics = [#tpu.dimension_semantics<parallel>], iteration_bounds = array<i64: 1>, scalar_prefetch = 0 : i64, scratch_operands = 0 : i64, tpu.core_type = #tpu.core_type<tc>, window_params = [{transform_indices = @transform_0, window_bounds = array<i64: 8, 128>}, {transform_indices = @transform_1, window_bounds = array<i64: 8, 14>}, {pipeline_mode = #tpu.pipeline_mode<synchronous>, transform_indices = @transform_2, window_bounds = array<i64: 128, 16>}, {pipeline_mode = #tpu.pipeline_mode<synchronous>, transform_indices = @transform_3, window_bounds = array<i64: 1, 16>}, {pipeline_mode = #tpu.pipeline_mode<synchronous>, transform_indices = @transform_4, window_bounds = array<i64: 16, 256>}, {pipeline_mode = #tpu.pipeline_mode<synchronous>, transform_indices = @transform_5, window_bounds = array<i64: 14, 256>}, {pipeline_mode = #tpu.pipeline_mode<synchronous>, transform_indices = @transform_6, window_bounds = array<i64: 1, 256>}, {pipeline_mode = #tpu.pipeline_mode<synchronous>, transform_indices = @transform_7, window_bounds = array<i64: 256, 256>}, {pipeline_mode = #tpu.pipeline_mode<synchronous>, transform_indices = @transform_8, window_bounds = array<i64: 1, 256>}, {pipeline_mode = #tpu.pipeline_mode<synchronous>, transform_indices = @transform_9, window_bounds = array<i64: 1, 256>}, {pipeline_mode = #tpu.pipeline_mode<synchronous>, transform_indices = @transform_10, window_bounds = array<i64: 1, 1>}, {transform_indices = @transform_11, window_bounds = array<i64: 1, 1, 8>}]} {
    %c0 = arith.constant 0 : index
    %c0_0 = arith.constant 0 : index
    %0 = vector.load %arg1[%c0, %c0_0] : memref<8x128xf32, #tpu.memory_space<vmem>>, vector<8x128xf32>
    %c0_1 = arith.constant 0 : index
    %c0_2 = arith.constant 0 : index
    %1 = vector.load %arg3[%c0_1, %c0_2] : memref<128x16xf32, #tpu.memory_space<vmem>>, vector<128x16xf32>
    %cst = arith.constant dense<0.000000e+00> : vector<8x16xf32>
    %2 = tpu.matmul %0, %1, %cst {dimension_numbers = #tpu.dot_dimension_numbers<[1], [0], [0], [1], [0, 0, 1, 1], [], []>} : vector<8x128xf32>, vector<128x16xf32>, vector<8x16xf32> -> vector<8x16xf32>
    %c0_3 = arith.constant 0 : index
    %c0_4 = arith.constant 0 : index
    %3 = vector.load %arg4[%c0_3, %c0_4] : memref<1x16xf32, #tpu.memory_space<vmem>>, vector<1x16xf32>
    %4 = vector.broadcast %3 : vector<1x16xf32> to vector<8x16xf32>
    %5 = arith.addf %2, %4 : vector<8x16xf32>
    %6 = math.tanh %5 : vector<8x16xf32>
    %c0_5 = arith.constant 0 : index
    %c0_6 = arith.constant 0 : index
    %7 = vector.load %arg5[%c0_5, %c0_6] : memref<16x256xf32, #tpu.memory_space<vmem>>, vector<16x256xf32>
    %cst_7 = arith.constant dense<0.000000e+00> : vector<8x256xf32>
    %8 = tpu.matmul %6, %7, %cst_7 {dimension_numbers = #tpu.dot_dimension_numbers<[1], [0], [0], [1], [0, 0, 1, 1], [], []>} : vector<8x16xf32>, vector<16x256xf32>, vector<8x256xf32> -> vector<8x256xf32>
    %c0_8 = arith.constant 0 : index
    %c0_9 = arith.constant 0 : index
    %9 = vector.load %arg2[%c0_8, %c0_9] : memref<8x14xf32, #tpu.memory_space<vmem>>, vector<8x14xf32>
    %c0_10 = arith.constant 0 : index
    %c0_11 = arith.constant 0 : index
    %10 = vector.load %arg6[%c0_10, %c0_11] : memref<14x256xf32, #tpu.memory_space<vmem>>, vector<14x256xf32>
    %cst_12 = arith.constant dense<0.000000e+00> : vector<8x256xf32>
    %11 = tpu.matmul %9, %10, %cst_12 {dimension_numbers = #tpu.dot_dimension_numbers<[1], [0], [0], [1], [0, 0, 1, 1], [], []>} : vector<8x14xf32>, vector<14x256xf32>, vector<8x256xf32> -> vector<8x256xf32>
    %12 = arith.addf %8, %11 : vector<8x256xf32>
    %c0_13 = arith.constant 0 : index
    %c0_14 = arith.constant 0 : index
    %13 = vector.load %arg7[%c0_13, %c0_14] : memref<1x256xf32, #tpu.memory_space<vmem>>, vector<1x256xf32>
    %14 = vector.broadcast %13 : vector<1x256xf32> to vector<8x256xf32>
    %15 = arith.addf %12, %14 : vector<8x256xf32>
    %cst_15 = arith.constant 0.000000e+00 : f32
    %16 = vector.broadcast %cst_15 : f32 to vector<8x256xf32>
    %17 = arith.maximumf %15, %16 : vector<8x256xf32>
    %c0_16 = arith.constant 0 : index
    %c0_17 = arith.constant 0 : index
    %18 = vector.load %arg8[%c0_16, %c0_17] : memref<256x256xf32, #tpu.memory_space<vmem>>, vector<256x256xf32>
    %cst_18 = arith.constant dense<0.000000e+00> : vector<8x256xf32>
    %19 = tpu.matmul %17, %18, %cst_18 {dimension_numbers = #tpu.dot_dimension_numbers<[1], [0], [0], [1], [0, 0, 1, 1], [], []>} : vector<8x256xf32>, vector<256x256xf32>, vector<8x256xf32> -> vector<8x256xf32>
    %c0_19 = arith.constant 0 : index
    %c0_20 = arith.constant 0 : index
    %20 = vector.load %arg9[%c0_19, %c0_20] : memref<1x256xf32, #tpu.memory_space<vmem>>, vector<1x256xf32>
    %21 = vector.broadcast %20 : vector<1x256xf32> to vector<8x256xf32>
    %22 = arith.addf %19, %21 : vector<8x256xf32>
    %cst_21 = arith.constant 0.000000e+00 : f32
    %23 = vector.broadcast %cst_21 : f32 to vector<8x256xf32>
    %24 = arith.maximumf %22, %23 : vector<8x256xf32>
    %c0_22 = arith.constant 0 : index
    %c0_23 = arith.constant 0 : index
    %25 = vector.load %arg10[%c0_22, %c0_23] : memref<1x256xf32, #tpu.memory_space<vmem>>, vector<1x256xf32>
    %cst_24 = arith.constant dense<0.000000e+00> : vector<1x8xf32>
    %26 = tpu.matmul %25, %24, %cst_24 {dimension_numbers = #tpu.dot_dimension_numbers<[1], [1], [0], [0], [0, 0, 1, 0], [], []>} : vector<1x256xf32>, vector<8x256xf32>, vector<1x8xf32> -> vector<1x8xf32>
    %c0_25 = arith.constant 0 : index
    %c0_26 = arith.constant 0 : index
    %27 = vector.load %arg11[%c0_25, %c0_26] : memref<1x1xf32, #tpu.memory_space<vmem>>, vector<1x1xf32>
    %28 = vector.broadcast %27 : vector<1x1xf32> to vector<1x8xf32>
    %29 = arith.addf %26, %28 : vector<1x8xf32>
    %30 = vector.shape_cast %29 : vector<1x8xf32> to vector<1x1x8xf32>
    %c0_27 = arith.constant 0 : index
    %c0_28 = arith.constant 0 : index
    %c0_29 = arith.constant 0 : index
    %31 = vector.load %arg12[%c0_27, %c0_28, %c0_29] : memref<1x1x8xf32, #tpu.memory_space<vmem>>, vector<1x1x8xf32>
    tpu.vector_store %arg12[%c0_27, %c0_28, %c0_29], %30 {strides = array<i32>} : memref<1x1x8xf32, #tpu.memory_space<vmem>>, vector<1x1x8xf32>,
    return
  }
  func.func @transform_0(%arg0: i32) -> (i32, i32) {
    %c0_i32 = arith.constant 0 : i32
    %c0_i32_0 = arith.constant 0 : i32
    return %arg0, %c0_i32 : i32, i32
  }
  func.func @transform_1(%arg0: i32) -> (i32, i32) {
    %c0_i32 = arith.constant 0 : i32
    %c0_i32_0 = arith.constant 0 : i32
    return %arg0, %c0_i32 : i32, i32
  }
  func.func @transform_2(%arg0: i32) -> (i32, i32) {
    %c0_i32 = arith.constant 0 : i32
    %c0_i32_0 = arith.constant 0 : i32
    %c0_i32_1 = arith.constant 0 : i32
    return %c0_i32, %c0_i32_0 : i32, i32
  }
  func.func @transform_3(%arg0: i32) -> (i32, i32) {
    %c0_i32 = arith.constant 0 : i32
    %c0_i32_0 = arith.constant 0 : i32
    %c0_i32_1 = arith.constant 0 : i32
    return %c0_i32, %c0_i32_0 : i32, i32
  }
  func.func @transform_4(%arg0: i32) -> (i32, i32) {
    %c0_i32 = arith.constant 0 : i32
    %c0_i32_0 = arith.constant 0 : i32
    %c0_i32_1 = arith.constant 0 : i32
    return %c0_i32, %c0_i32_0 : i32, i32
  }
  func.func @transform_5(%arg0: i32) -> (i32, i32) {
    %c0_i32 = arith.constant 0 : i32
    %c0_i32_0 = arith.constant 0 : i32
    %c0_i32_1 = arith.constant 0 : i32
    return %c0_i32, %c0_i32_0 : i32, i32
  }
  func.func @transform_6(%arg0: i32) -> (i32, i32) {
    %c0_i32 = arith.constant 0 : i32
    %c0_i32_0 = arith.constant 0 : i32
    %c0_i32_1 = arith.constant 0 : i32
    return %c0_i32, %c0_i32_0 : i32, i32
  }
  func.func @transform_7(%arg0: i32) -> (i32, i32) {
    %c0_i32 = arith.constant 0 : i32
    %c0_i32_0 = arith.constant 0 : i32
    %c0_i32_1 = arith.constant 0 : i32
    return %c0_i32, %c0_i32_0 : i32, i32
  }
  func.func @transform_8(%arg0: i32) -> (i32, i32) {
    %c0_i32 = arith.constant 0 : i32
    %c0_i32_0 = arith.constant 0 : i32
    %c0_i32_1 = arith.constant 0 : i32
    return %c0_i32, %c0_i32_0 : i32, i32
  }
  func.func @transform_9(%arg0: i32) -> (i32, i32) {
    %c0_i32 = arith.constant 0 : i32
    %c0_i32_0 = arith.constant 0 : i32
    %c0_i32_1 = arith.constant 0 : i32
    return %c0_i32, %c0_i32_0 : i32, i32
  }
  func.func @transform_10(%arg0: i32) -> (i32, i32) {
    %c0_i32 = arith.constant 0 : i32
    %c0_i32_0 = arith.constant 0 : i32
    %c0_i32_1 = arith.constant 0 : i32
    return %c0_i32, %c0_i32_0 : i32, i32
  }
  func.func @transform_11(%arg0: i32) -> (i32, i32, i32) {
    %c0_i32 = arith.constant 0 : i32
    %c0_i32_0 = arith.constant 0 : i32
    %c0_i32_1 = arith.constant 0 : i32
    return %arg0, %c0_i32, %c0_i32_0 : i32, i32, i32
  }
}

</mosaic_0001>

<llo_original>
// kernel: maple_critic_forward.1
$region0: #{maple_critic_forward.1}
  #allocation0 [shape = 'u32[]', space=smem, size = 0x4, offset = 0x4, fixed_abs, tag = 'smem constant byte address 0x4 - core index']
  #allocation1 [shape = 'u32[144,128]{1,0:T(1,128)}', space=vmem, size = 0x12000, scoped, tag = 'internal scratch']
  #allocation2 [shape = 'f32[1,1]{1,0:T(1,128)S(1)}', space=vmem, size = 0x200, scoped, tag = 'scoped memory for maple_critic_forward.1']
  %s0 = inlined_call_operand.vmem [shape: f32[8,128], index: 0, kind: input, shape index: {}]
  %s1 = inlined_call_operand.vmem [shape: f32[8,14], index: 1, kind: input, shape index: {}]
  %s2 = inlined_call_operand.vmem [shape: f32[128,16], index: 2, kind: input, shape index: {}]
  %s3 = inlined_call_operand.vmem [shape: f32[1,16], index: 3, kind: input, shape index: {}]
  %s4 = inlined_call_operand.vmem [shape: f32[16,256], index: 4, kind: input, shape index: {}]
  %s5 = inlined_call_operand.vmem [shape: f32[14,256], index: 5, kind: input, shape index: {}]
  %s6 = inlined_call_operand.vmem [shape: f32[1,256], index: 6, kind: input, shape index: {}]
  %s7 = inlined_call_operand.hbm [shape: f32[256,256], index: 7, kind: input, shape index: {}]
  %s8 = inlined_call_operand.vmem [shape: f32[1,256], index: 8, kind: input, shape index: {}]
  %s9 = inlined_call_operand.vmem [shape: f32[1,256], index: 9, kind: input, shape index: {}]
  %s10 = inlined_call_operand.<no memory space> [shape: f32[1,1], index: 10, kind: input, shape index: {}]
  %s11 = inlined_call_operand.hbm [shape: f32[1,1,8], index: 11, kind: output, shape index: {}]
  %s12 = sld [smem:[#allocation0]]
  $region58: #{maple_critic_forward.1} parent=0
    _
  %s14 = ssub.s32 1, %s12
  %s15 = scalar_select 0, %s14, %s12
  %v16 = vstv %s10
  %17 = vst [vmem:[#allocation2] sm:$0x1] %v16
  $region1: #{maple_critic_forward.1} parent=0
    #allocation3 [shape = 'u8[262144]{0}', space=vmem, size = 0x40000, scoped, tag = 'input window, operand 7, single buffered']
    #allocation4 [shape = 's32[1]{0}', space=sflag, size = 0x4, scoped, tag = 'scoped memory for maple_critic_forward.1']
    #allocation5 [shape = 's32[1]{0}', space=sflag, size = 0x4, scoped, tag = 'scoped memory for maple_critic_forward.1']
    #allocation6 [shape = 'u8[512]{0}', space=vmem, size = 0x400, scoped, tag = 'output window, operand 0, single buffered']
    %18 = vsyncpa [#allocation4], 0
    %19 = vsyncpa [#allocation5], 0
    // Predicated region
    $region2: #{maple_critic_forward.1} parent=1 // pred_check
      _
    $region3: #{maple_critic_forward.1} parent=1 // pred_check_branch
      %21 = sbr.rel (0) target = $region5
    $region4: #{maple_critic_forward.1} parent=1 // pred_region
      _
    $region5: #{maple_critic_forward.1} parent=1 // pred_fallthru
      _
    // Predicated region
    $region6: #{maple_critic_forward.1} parent=1 // pred_check
      _
    $region7: #{maple_critic_forward.1} parent=1 // pred_check_branch
      %23 = sbr.rel (0) target = $region9
    $region8: #{maple_critic_forward.1} parent=1 // pred_region
      _
    $region9: #{maple_critic_forward.1} parent=1 // pred_fallthru
      _
    // Predicated region
    $region10: #{maple_critic_forward.1} parent=1 // pred_check
      _
    $region11: #{maple_critic_forward.1} parent=1 // pred_check_branch
      %25 = sbr.rel (0) target = $region13
    $region12: #{maple_critic_forward.1} parent=1 // pred_region
      _
    $region13: #{maple_critic_forward.1} parent=1 // pred_fallthru
      _
    // Predicated region
    $region14: #{maple_critic_forward.1} parent=1 // pred_check
      _
    $region15: #{maple_critic_forward.1} parent=1 // pred_check_branch
      %27 = sbr.rel (0) target = $region17
    $region16: #{maple_critic_forward.1} parent=1 // pred_region
      _
    $region17: #{maple_critic_forward.1} parent=1 // pred_fallthru
      _
    // Predicated region
    $region18: #{maple_critic_forward.1} parent=1 // pred_check
      _
    $region19: #{maple_critic_forward.1} parent=1 // pred_check_branch
      %29 = sbr.rel (0) target = $region21
    $region20: #{maple_critic_forward.1} parent=1 // pred_region
      _
    $region21: #{maple_critic_forward.1} parent=1 // pred_fallthru
      _
    // Predicated region
    $region22: #{maple_critic_forward.1} parent=1 // pred_check
      _
    $region23: #{maple_critic_forward.1} parent=1 // pred_check_branch
      %31 = sbr.rel (0) target = $region25
    $region24: #{maple_critic_forward.1} parent=1 // pred_region
      _
    $region25: #{maple_critic_forward.1} parent=1 // pred_fallthru
      _
    // Predicated region
    $region26: #{maple_critic_forward.1} parent=1 // pred_check
      _
    $region27: #{maple_critic_forward.1} parent=1 // pred_check_branch
      %33 = sbr.rel (0) target = $region29
    $region28: #{maple_critic_forward.1} parent=1 // pred_region
      _
    $region29: #{maple_critic_forward.1} parent=1 // pred_fallthru
      _
    // Predicated region
    $region30: #{maple_critic_forward.1} parent=1 // pred_check
      _
    $region31: #{maple_critic_forward.1} parent=1 // pred_check_branch
      %35 = sbr.rel (0) target = $region33
    $region32: #{maple_critic_forward.1} parent=1 // pred_region
      %s37 = ssub.s32 8192, 8192
      %38 = vsyncadd [#allocation4], %s37
      %s39 = sshll.u32 [#allocation3], 4
      %s40 = int_to_ptr.vmem [resolvable:$true] %s39
      %45 = dma.hbm_to_vmem [thread:$0]  %s7, 8192, %s40, [#allocation4], 256, 256, 16
    $region33: #{maple_critic_forward.1} parent=1 // pred_fallthru
      _
    // Predicated region
    $region34: #{maple_critic_forward.1} parent=1 // pred_check
      _
    $region35: #{maple_critic_forward.1} parent=1 // pred_check_branch
      %47 = sbr.rel (0) target = $region37
    $region36: #{maple_critic_forward.1} parent=1 // pred_region
      _
    $region37: #{maple_critic_forward.1} parent=1 // pred_fallthru
      _
    // Predicated region
    $region38: #{maple_critic_forward.1} parent=1 // pred_check
      _
    $region39: #{maple_critic_forward.1} parent=1 // pred_check_branch
      %49 = sbr.rel (0) target = $region41
    $region40: #{maple_critic_forward.1} parent=1 // pred_region
      _
    $region41: #{maple_critic_forward.1} parent=1 // pred_fallthru
      _
    // Predicated region
    $region42: #{maple_critic_forward.1} parent=1 // pred_check
      _
    $region43: #{maple_critic_forward.1} parent=1 // pred_check_branch
      %51 = sbr.rel (0) target = $region45
    $region44: #{maple_critic_forward.1} parent=1 // pred_region
      _
    $region45: #{maple_critic_forward.1} parent=1 // pred_fallthru
      _
    // Predicated region
    $region46: #{maple_critic_forward.1} parent=1 // pred_check
      _
    $region47: #{maple_critic_forward.1} parent=1 // pred_check_branch
      %53 = sbr.rel (0) target = $region49
    $region48: #{maple_critic_forward.1} parent=1 // pred_region
      %54 = dma.done [#allocation4], 8192
    $region49: #{maple_critic_forward.1} parent=1 // pred_fallthru
      _
    %v55 = vld [vmem:[%s0] sm:$0xff]
    %v56 = vld [vmem:[%s2] sm:$0xff]
    %v57 = vld [vmem:[%s2 + $0x8] sm:$0xff]
    %v58 = vld [vmem:[%s2 + $0x10] sm:$0xff]
    %v59 = vld [vmem:[%s2 + $0x18] sm:$0xff]
    %v60 = vld [vmem:[%s2 + $0x20] sm:$0xff]
    %v61 = vld [vmem:[%s2 + $0x28] sm:$0xff]
    %v62 = vld [vmem:[%s2 + $0x30] sm:$0xff]
    %v63 = vld [vmem:[%s2 + $0x38] sm:$0xff]
    %v64 = vld [vmem:[%s2 + $0x40] sm:$0xff]
    %v65 = vld [vmem:[%s2 + $0x48] sm:$0xff]
    %v66 = vld [vmem:[%s2 + $0x50] sm:$0xff]
    %v67 = vld [vmem:[%s2 + $0x58] sm:$0xff]
    %v68 = vld [vmem:[%s2 + $0x60] sm:$0xff]
    %v69 = vld [vmem:[%s2 + $0x68] sm:$0xff]
    %v70 = vld [vmem:[%s2 + $0x70] sm:$0xff]
    %v71 = vld [vmem:[%s2 + $0x78] sm:$0xff]
    %v72 = vld [vmem:[%s3] sm:$0x1]
    %v74 = vlaneseq
    %v75 = vshrl.u32 %v74, 7
    %v76 = vsub.s32 0, %v75
    %v77 = vrot.slane %v72, %v76
    %79 = vmatprep.subr.mxu0 0.0
    %80 = vmatpush1.msra.mxu0 %v56
    %81 = vmatprep.subr.mxu0 0.0
    %82 = vmatpush1.msra.mxu0 %v57
    %83 = vmatprep.subr.mxu0 0.0
    %84 = vmatpush1.msra.mxu0 %v58
    %85 = vmatprep.subr.mxu0 0.0
    %86 = vmatpush1.msra.mxu0 %v59
    %87 = vmatprep.subr.mxu0 0.0
    %88 = vmatpush1.msra.mxu0 %v60
    %89 = vmatprep.subr.mxu0 0.0
    %90 = vmatpush1.msra.mxu0 %v61
    %91 = vmatprep.subr.mxu0 0.0
    %92 = vmatpush1.msra.mxu0 %v62
    %93 = vmatprep.subr.mxu0 0.0
    %94 = vmatpush1.msra.mxu0 %v63
    %95 = vmatprep.subr.mxu0 0.0
    %96 = vmatpush1.msra.mxu0 %v64
    %97 = vmatprep.subr.mxu0 0.0
    %98 = vmatpush1.msra.mxu0 %v65
    %99 = vmatprep.subr.mxu0 0.0
    %100 = vmatpush1.msra.mxu0 %v66
    %101 = vmatprep.subr.mxu0 0.0
    %102 = vmatpush1.msra.mxu0 %v67
    %103 = vmatprep.subr.mxu0 0.0
    %104 = vmatpush1.msra.mxu0 %v68
    %105 = vmatprep.subr.mxu0 0.0
    %106 = vmatpush1.msra.mxu0 %v69
    %107 = vmatprep.subr.mxu0 0.0
    %108 = vmatpush1.msra.mxu0 %v70
    %109 = vmatprep.subr.mxu0 0.0
    %110 = vmatpush1.msra.mxu0 %v71
    %111 = vmatprep.subr.mxu0 0.0
    %112 = vmatpush1.msra.mxu0 0.0
    %113 = vmatprep.subr.mxu0 0.0
    %114 = vmatpush1.msra.mxu0 0.0
    %115 = vmatprep.subr.mxu0 0.0
    %116 = vmatpush1.msra.mxu0 0.0
    %117 = vmatprep.subr.mxu0 0.0
    %118 = vmatpush1.msra.mxu0 0.0
    %119 = vmatprep.subr.mxu0 0.0
    %120 = vmatpush1.msra.mxu0 0.0
    %121 = vmatprep.subr.mxu0 0.0
    %122 = vmatpush1.msra.mxu0 0.0
    %123 = vmatprep.subr.mxu0 0.0
    %124 = vmatpush1.msra.mxu0 0.0
    %125 = vmatprep.subr.mxu0 0.0
    %126 = vmatpush1.msra.mxu0 0.0
    %127 = vmatprep.subr.mxu0 0.0
    %128 = vmatpush1.msra.mxu0 0.0
    %129 = vmatprep.subr.mxu0 0.0
    %130 = vmatpush1.msra.mxu0 0.0
    %131 = vmatprep.subr.mxu0 0.0
    %132 = vmatpush1.msra.mxu0 0.0
    %133 = vmatprep.subr.mxu0 0.0
    %134 = vmatpush1.msra.mxu0 0.0
    %135 = vmatprep.subr.mxu0 0.0
    %136 = vmatpush1.msra.mxu0 0.0
    %137 = vmatprep.subr.mxu0 0.0
    %138 = vmatpush1.msra.mxu0 0.0
    %139 = vmatprep.subr.mxu0 0.0
    %140 = vmatpush1.msra.mxu0 0.0
    %141 = vmatprep.subr.mxu0 0.0
    %142 = vmatpush1.msra.mxu0 0.0
    %143 = vmatprep.mubr.f32.mxu0 0.0
    %144 = vmatmul.mubr.f32.gmra.mrb[0].mxu0 %v55
    %v145 = vpop.f32.mrb[0].mxu0
    %v146 = vadd.f32 %v77, %v145
    %v147 = vpop.f32.mrb[0].mxu0
    %148 = vdwg.mxu0
    %v149 = vtanh.pop %v146
    %v150 = vld [vmem:[%s4] sm:$0xff]
    %v151 = vld [vmem:[%s4 + $0x8] sm:$0xff]
    %v152 = vld [vmem:[%s4 + $0x10] sm:$0xff]
    %v153 = vld [vmem:[%s4 + $0x18] sm:$0xff]
    %v154 = vld [vmem:[%s1] sm:$0xff]
    %v155 = vld [vmem:[%s5] sm:$0xff]
    %v156 = vld [vmem:[%s5 + $0x8] sm:$0xff]
    %v157 = vld [vmem:[%s5 + $0x10] sm:$0x3f]
    %v158 = vld [vmem:[%s5 + $0x18] sm:$0x3f]
    %vm159 = vcmask 113664
    %v161 = vsel %vm159, %v154, 0
    %vm163 = vcmask 1045504
    %v165 = vsel %vm163, %v157, 0
    %v168 = vsel %vm163, %v158, 0
    %170 = vmatprep.subr.mxu0 %v156
    %171 = vmatpush1.msra.mxu0 %v155
    %172 = vmatprep.subr.mxu0 %v168
    %173 = vmatpush1.msra.mxu0 %v165
    %174 = vmatprep.subr.mxu0 0.0
    %175 = vmatpush1.msra.mxu0 0.0
    %176 = vmatprep.subr.mxu0 0.0
    %177 = vmatpush1.msra.mxu0 0.0
    %178 = vmatprep.subr.mxu0 0.0
    %179 = vmatpush1.msra.mxu0 0.0
    %180 = vmatprep.subr.mxu0 0.0
    %181 = vmatpush1.msra.mxu0 0.0
    %182 = vmatprep.subr.mxu0 0.0
    %183 = vmatpush1.msra.mxu0 0.0
    %184 = vmatprep.subr.mxu0 0.0
    %185 = vmatpush1.msra.mxu0 0.0
    %186 = vmatprep.subr.mxu0 0.0
    %187 = vmatpush1.msra.mxu0 0.0
    %188 = vmatprep.subr.mxu0 0.0
    %189 = vmatpush1.msra.mxu0 0.0
    %190 = vmatprep.subr.mxu0 0.0
    %191 = vmatpush1.msra.mxu0 0.0
    %192 = vmatprep.subr.mxu0 0.0
    %193 = vmatpush1.msra.mxu0 0.0
    %194 = vmatprep.subr.mxu0 0.0
    %195 = vmatpush1.msra.mxu0 0.0
    %196 = vmatprep.subr.mxu0 0.0
    %197 = vmatpush1.msra.mxu0 0.0
    %198 = vmatprep.subr.mxu0 0.0
    %199 = vmatpush1.msra.mxu0 0.0
    %200 = vmatprep.subr.mxu0 0.0
    %201 = vmatpush1.msra.mxu0 0.0
    %202 = vmatprep.subr.mxu0 0.0
    %203 = vmatpush1.msra.mxu0 0.0
    %204 = vmatprep.subr.mxu0 0.0
    %205 = vmatpush1.msra.mxu0 0.0
    %206 = vmatprep.subr.mxu0 0.0
    %207 = vmatpush1.msra.mxu0 0.0
    %208 = vmatprep.subr.mxu0 0.0
    %209 = vmatpush1.msra.mxu0 0.0
    %210 = vmatprep.subr.mxu0 0.0
    %211 = vmatpush1.msra.mxu0 0.0
    %212 = vmatprep.subr.mxu0 0.0
    %213 = vmatpush1.msra.mxu0 0.0
    %214 = vmatprep.subr.mxu0 0.0
    %215 = vmatpush1.msra.mxu0 0.0
    %216 = vmatprep.subr.mxu0 0.0
    %217 = vmatpush1.msra.mxu0 0.0
    %218 = vmatprep.subr.mxu0 0.0
    %219 = vmatpush1.msra.mxu0 0.0
    %220 = vmatprep.subr.mxu0 0.0
    %221 = vmatpush1.msra.mxu0 0.0
    %222 = vmatprep.subr.mxu0 0.0
    %223 = vmatpush1.msra.mxu0 0.0
    %224 = vmatprep.subr.mxu0 0.0
    %225 = vmatpush1.msra.mxu0 0.0
    %226 = vmatprep.subr.mxu0 0.0
    %227 = vmatpush1.msra.mxu0 0.0
    %228 = vmatprep.subr.mxu0 0.0
    %229 = vmatpush1.msra.mxu0 0.0
    %230 = vmatprep.subr.mxu0 0.0
    %231 = vmatpush1.msra.mxu0 0.0
    %232 = vmatprep.subr.mxu0 0.0
    %233 = vmatpush1.msra.mxu0 0.0
    %234 = vmatprep.mubr.f32.mxu0 0.0
    %235 = vmatmul.mubr.f32.gmra.mrb[0].mxu0 %v161
    %v236 = vpop.f32.mrb[0].mxu0
    %v237 = vadd.f32 0.0, %v236
    %v238 = vpop.f32.mrb[0].mxu0
    %v239 = vadd.f32 0.0, %v238
    %240 = vdwg.mxu0
    %vm241 = vcmask 130048
    %v243 = vsel %vm241, %v149, 0
    %245 = vmatprep.subr.mxu0 %v151
    %246 = vmatpush1.msra.mxu0 %v150
    %247 = vmatprep.subr.mxu0 %v153
    %248 = vmatpush1.msra.mxu0 %v152
    %249 = vmatprep.subr.mxu0 0.0
    %250 = vmatpush1.msra.mxu0 0.0
    %251 = vmatprep.subr.mxu0 0.0
    %252 = vmatpush1.msra.mxu0 0.0
    %253 = vmatprep.subr.mxu0 0.0
    %254 = vmatpush1.msra.mxu0 0.0
    %255 = vmatprep.subr.mxu0 0.0
    %256 = vmatpush1.msra.mxu0 0.0
    %257 = vmatprep.subr.mxu0 0.0
    %258 = vmatpush1.msra.mxu0 0.0
    %259 = vmatprep.subr.mxu0 0.0
    %260 = vmatpush1.msra.mxu0 0.0
    %261 = vmatprep.subr.mxu0 0.0
    %262 = vmatpush1.msra.mxu0 0.0
    %263 = vmatprep.subr.mxu0 0.0
    %264 = vmatpush1.msra.mxu0 0.0
    %265 = vmatprep.subr.mxu0 0.0
    %266 = vmatpush1.msra.mxu0 0.0
    %267 = vmatprep.subr.mxu0 0.0
    %268 = vmatpush1.msra.mxu0 0.0
    %269 = vmatprep.subr.mxu0 0.0
    %270 = vmatpush1.msra.mxu0 0.0
    %271 = vmatprep.subr.mxu0 0.0
    %272 = vmatpush1.msra.mxu0 0.0
    %273 = vmatprep.subr.mxu0 0.0
    %274 = vmatpush1.msra.mxu0 0.0
    %275 = vmatprep.subr.mxu0 0.0
    %276 = vmatpush1.msra.mxu0 0.0
    %277 = vmatprep.subr.mxu0 0.0
    %278 = vmatpush1.msra.mxu0 0.0
    %279 = vmatprep.subr.mxu0 0.0
    %280 = vmatpush1.msra.mxu0 0.0
    %281 = vmatprep.subr.mxu0 0.0
    %282 = vmatpush1.msra.mxu0 0.0
    %283 = vmatprep.subr.mxu0 0.0
    %284 = vmatpush1.msra.mxu0 0.0
    %285 = vmatprep.subr.mxu0 0.0
    %286 = vmatpush1.msra.mxu0 0.0
    %287 = vmatprep.subr.mxu0 0.0
    %288 = vmatpush1.msra.mxu0 0.0
    %289 = vmatprep.subr.mxu0 0.0
    %290 = vmatpush1.msra.mxu0 0.0
    %291 = vmatprep.subr.mxu0 0.0
    %292 = vmatpush1.msra.mxu0 0.0
    %293 = vmatprep.subr.mxu0 0.0
    %294 = vmatpush1.msra.mxu0 0.0
    %295 = vmatprep.subr.mxu0 0.0
    %296 = vmatpush1.msra.mxu0 0.0
    %297 = vmatprep.subr.mxu0 0.0
    %298 = vmatpush1.msra.mxu0 0.0
    %299 = vmatprep.subr.mxu0 0.0
    %300 = vmatpush1.msra.mxu0 0.0
    %301 = vmatprep.subr.mxu0 0.0
    %302 = vmatpush1.msra.mxu0 0.0
    %303 = vmatprep.subr.mxu0 0.0
    %304 = vmatpush1.msra.mxu0 0.0
    %305 = vmatprep.subr.mxu0 0.0
    %306 = vmatpush1.msra.mxu0 0.0
    %307 = vmatprep.subr.mxu0 0.0
    %308 = vmatpush1.msra.mxu0 0.0
    %309 = vmatprep.mubr.f32.mxu0 0.0
    %310 = vmatmul.mubr.f32.gmra.mrb[0].mxu0 %v243
    %v311 = vpop.f32.mrb[0].mxu0
    %v312 = vadd.f32 %v237, %v311
    %v313 = vpop.f32.mrb[0].mxu0
    %v314 = vadd.f32 %v239, %v313
    %315 = vdwg.mxu0
    %v316 = vld [vmem:[%s6] sm:$0x3]
    %v318 = vlaneseq
    %v319 = vshrl.u32 %v318, 7
    %v320 = vsub.s32 0, %v319
    %v321 = vrot.slane %v316, %v320
    %v322 = vlaneseq
    %v323 = vshrl.u32 %v322, 7
    %v324 = vsub.s32 1, %v323
    %v325 = vrot.slane %v316, %v324
    %v328 = vadd.f32 %v312, %v321
    %v329 = vadd.f32 %v314, %v325
    %v330 = vmax.f32 %v328, 0.0
    %v331 = vmax.f32 %v329, 0.0
    %v332 = vld [vmem:[#allocation3] sm:$0xff]
    %v333 = vld [vmem:[#allocation3 + $0x8] sm:$0xff]
    %v334 = vld [vmem:[#allocation3 + $0x10] sm:$0xff]
    %v335 = vld [vmem:[#allocation3 + $0x18] sm:$0xff]
    %v336 = vld [vmem:[#allocation3 + $0x20] sm:$0xff]
    %v337 = vld [vmem:[#allocation3 + $0x28] sm:$0xff]
    %v338 = vld [vmem:[#allocation3 + $0x30] sm:$0xff]
    %v339 = vld [vmem:[#allocation3 + $0x38] sm:$0xff]
    %v340 = vld [vmem:[#allocation3 + $0x40] sm:$0xff]
    %v341 = vld [vmem:[#allocation3 + $0x48] sm:$0xff]
    %v342 = vld [vmem:[#allocation3 + $0x50] sm:$0xff]
    %v343 = vld [vmem:[#allocation3 + $0x58] sm:$0xff]
    %v344 = vld [vmem:[#allocation3 + $0x60] sm:$0xff]
    %v345 = vld [vmem:[#allocation3 + $0x68] sm:$0xff]
    %v346 = vld [vmem:[#allocation3 + $0x70] sm:$0xff]
    %v347 = vld [vmem:[#allocation3 + $0x78] sm:$0xff]
    %v348 = vld [vmem:[#allocation3 + $0x80] sm:$0xff]
    %v349 = vld [vmem:[#allocation3 + $0x88] sm:$0xff]
    %v350 = vld [vmem:[#allocation3 + $0x90] sm:$0xff]
    %v351 = vld [vmem:[#allocation3 + $0x98] sm:$0xff]
    %v352 = vld [vmem:[#allocation3 + $0xa0] sm:$0xff]
    %v353 = vld [vmem:[#allocation3 + $0xa8] sm:$0xff]
    %v354 = vld [vmem:[#allocation3 + $0xb0] sm:$0xff]
    %v355 = vld [vmem:[#allocation3 + $0xb8] sm:$0xff]
    %v356 = vld [vmem:[#allocation3 + $0xc0] sm:$0xff]
    %v357 = vld [vmem:[#allocation3 + $0xc8] sm:$0xff]
    %v358 = vld [vmem:[#allocation3 + $0xd0] sm:$0xff]
    %v359 = vld [vmem:[#allocation3 + $0xd8] sm:$0xff]
    %v360 = vld [vmem:[#allocation3 + $0xe0] sm:$0xff]
    %v361 = vld [vmem:[#allocation3 + $0xe8] sm:$0xff]
    %v362 = vld [vmem:[#allocation3 + $0xf0] sm:$0xff]
    %v363 = vld [vmem:[#allocation3 + $0xf8] sm:$0xff]
    %v364 = vld [vmem:[#allocation3 + $0x100] sm:$0xff]
    %v365 = vld [vmem:[#allocation3 + $0x108] sm:$0xff]
    %v366 = vld [vmem:[#allocation3 + $0x110] sm:$0xff]
    %v367 = vld [vmem:[#allocation3 + $0x118] sm:$0xff]
    %v368 = vld [vmem:[#allocation3 + $0x120] sm:$0xff]
    %v369 = vld [vmem:[#allocation3 + $0x128] sm:$0xff]
    %v370 = vld [vmem:[#allocation3 + $0x130] sm:$0xff]
    %v371 = vld [vmem:[#allocation3 + $0x138] sm:$0xff]
    %v372 = vld [vmem:[#allocation3 + $0x140] sm:$0xff]
    %v373 = vld [vmem:[#allocation3 + $0x148] sm:$0xff]
    %v374 = vld [vmem:[#allocation3 + $0x150] sm:$0xff]
    %v375 = vld [vmem:[#allocation3 + $0x158] sm:$0xff]
    %v376 = vld [vmem:[#allocation3 + $0x160] sm:$0xff]
    %v377 = vld [vmem:[#allocation3 + $0x168] sm:$0xff]
    %v378 = vld [vmem:[#allocation3 + $0x170] sm:$0xff]
    %v379 = vld [vmem:[#allocation3 + $0x178] sm:$0xff]
    %v380 = vld [vmem:[#allocation3 + $0x180] sm:$0xff]
    %v381 = vld [vmem:[#allocation3 + $0x188] sm:$0xff]
    %v382 = vld [vmem:[#allocation3 + $0x190] sm:$0xff]
    %v383 = vld [vmem:[#allocation3 + $0x198] sm:$0xff]
    %v384 = vld [vmem:[#allocation3 + $0x1a0] sm:$0xff]
    %v385 = vld [vmem:[#allocation3 + $0x1a8] sm:$0xff]
    %v386 = vld [vmem:[#allocation3 + $0x1b0] sm:$0xff]
    %v387 = vld [vmem:[#allocation3 + $0x1b8] sm:$0xff]
    %v388 = vld [vmem:[#allocation3 + $0x1c0] sm:$0xff]
    %v389 = vld [vmem:[#allocation3 + $0x1c8] sm:$0xff]
    %v390 = vld [vmem:[#allocation3 + $0x1d0] sm:$0xff]
    %v391 = vld [vmem:[#allocation3 + $0x1d8] sm:$0xff]
    %v392 = vld [vmem:[#allocation3 + $0x1e0] sm:$0xff]
    %v393 = vld [vmem:[#allocation3 + $0x1e8] sm:$0xff]
    %v394 = vld [vmem:[#allocation3 + $0x1f0] sm:$0xff]
    %v395 = vld [vmem:[#allocation3 + $0x1f8] sm:$0xff]
    %v396 = vld [vmem:[%s8] sm:$0x3]
    %v398 = vlaneseq
    %v399 = vshrl.u32 %v398, 7
    %v400 = vsub.s32 0, %v399
    %v401 = vrot.slane %v396, %v400
    %v402 = vlaneseq
    %v403 = vshrl.u32 %v402, 7
    %v404 = vsub.s32 1, %v403
    %v405 = vrot.slane %v396, %v404
    %408 = vmatprep.subr.mxu0 %v333
    %409 = vmatpush1.msra.mxu0 %v332
    %410 = vmatprep.subr.mxu0 %v335
    %411 = vmatpush1.msra.mxu0 %v334
    %412 = vmatprep.subr.mxu0 %v337
    %413 = vmatpush1.msra.mxu0 %v336
    %414 = vmatprep.subr.mxu0 %v339
    %415 = vmatpush1.msra.mxu0 %v338
    %416 = vmatprep.subr.mxu0 %v341
    %417 = vmatpush1.msra.mxu0 %v340
    %418 = vmatprep.subr.mxu0 %v343
    %419 = vmatpush1.msra.mxu0 %v342
    %420 = vmatprep.subr.mxu0 %v345
    %421 = vmatpush1.msra.mxu0 %v344
    %422 = vmatprep.subr.mxu0 %v347
    %423 = vmatpush1.msra.mxu0 %v346
    %424 = vmatprep.subr.mxu0 %v349
    %425 = vmatpush1.msra.mxu0 %v348
    %426 = vmatprep.subr.mxu0 %v351
    %427 = vmatpush1.msra.mxu0 %v350
    %428 = vmatprep.subr.mxu0 %v353
    %429 = vmatpush1.msra.mxu0 %v352
    %430 = vmatprep.subr.mxu0 %v355
    %431 = vmatpush1.msra.mxu0 %v354
    %432 = vmatprep.subr.mxu0 %v357
    %433 = vmatpush1.msra.mxu0 %v356
    %434 = vmatprep.subr.mxu0 %v359
    %435 = vmatpush1.msra.mxu0 %v358
    %436 = vmatprep.subr.mxu0 %v361
    %437 = vmatpush1.msra.mxu0 %v360
    %438 = vmatprep.subr.mxu0 %v363
    %439 = vmatpush1.msra.mxu0 %v362
    %440 = vmatprep.subr.mxu0 %v365
    %441 = vmatpush1.msra.mxu0 %v364
    %442 = vmatprep.subr.mxu0 %v367
    %443 = vmatpush1.msra.mxu0 %v366
    %444 = vmatprep.subr.mxu0 %v369
    %445 = vmatpush1.msra.mxu0 %v368
    %446 = vmatprep.subr.mxu0 %v371
    %447 = vmatpush1.msra.mxu0 %v370
    %448 = vmatprep.subr.mxu0 %v373
    %449 = vmatpush1.msra.mxu0 %v372
    %450 = vmatprep.subr.mxu0 %v375
    %451 = vmatpush1.msra.mxu0 %v374
    %452 = vmatprep.subr.mxu0 %v377
    %453 = vmatpush1.msra.mxu0 %v376
    %454 = vmatprep.subr.mxu0 %v379
    %455 = vmatpush1.msra.mxu0 %v378
    %456 = vmatprep.subr.mxu0 %v381
    %457 = vmatpush1.msra.mxu0 %v380
    %458 = vmatprep.subr.mxu0 %v383
    %459 = vmatpush1.msra.mxu0 %v382
    %460 = vmatprep.subr.mxu0 %v385
    %461 = vmatpush1.msra.mxu0 %v384
    %462 = vmatprep.subr.mxu0 %v387
    %463 = vmatpush1.msra.mxu0 %v386
    %464 = vmatprep.subr.mxu0 %v389
    %465 = vmatpush1.msra.mxu0 %v388
    %466 = vmatprep.subr.mxu0 %v391
    %467 = vmatpush1.msra.mxu0 %v390
    %468 = vmatprep.subr.mxu0 %v393
    %469 = vmatpush1.msra.mxu0 %v392
    %470 = vmatprep.subr.mxu0 %v395
    %471 = vmatpush1.msra.mxu0 %v394
    %472 = vmatprep.mubr.f32.mxu0 %v331
    %473 = vmatmul.mubr.f32.gmra.mrb[0].mxu0 %v330
    %v474 = vpop.f32.mrb[0].mxu0
    %v475 = vadd.f32 %v401, %v474
    %v476 = vpop.f32.mrb[0].mxu0
    %v477 = vadd.f32 %v405, %v476
    %478 = vdwg.mxu0
    %v479 = vmax.f32 %v475, 0.0
    %v480 = vmax.f32 %v477, 0.0
    %v481 = vld [vmem:[%s9] sm:$0x3]
    %v482 = vld [vmem:[#allocation2] sm:$0x1]
    %484 = vset.pattern.permute.xlu0 0
    %485 = vperm.xlu0 %484, %v482
    %v486 = vpop.permute.xlu0 %485
    %v488 = vlaneseq
    %v489 = vshrl.u32 %v488, 7
    %v490 = vsub.s32 0, %v489
    %v491 = vrot.slane %v486, %v490
    %v493 = vlaneseq
    %v494 = vshrl.u32 %v493, 7
    %v495 = vsub.s32 0, %v494
    %v496 = vrot.slane %v481, %v495
    %v497 = vlaneseq
    %v498 = vshrl.u32 %v497, 7
    %v499 = vsub.s32 1, %v498
    %v500 = vrot.slane %v481, %v499
    %503 = vmatprep.subr.mxu0 %v480
    %504 = vmatpush1.xpose.msra.mxu0 %v479
    %505 = vmatprep.subr.mxu0 0.0
    %506 = vmatpush1.xpose.msra.mxu0 0.0
    %507 = vmatprep.subr.mxu0 0.0
    %508 = vmatpush1.xpose.msra.mxu0 0.0
    %509 = vmatprep.subr.mxu0 0.0
    %510 = vmatpush1.xpose.msra.mxu0 0.0
    %511 = vmatprep.subr.mxu0 0.0
    %512 = vmatpush1.xpose.msra.mxu0 0.0
    %513 = vmatprep.subr.mxu0 0.0
    %514 = vmatpush1.xpose.msra.mxu0 0.0
    %515 = vmatprep.subr.mxu0 0.0
    %516 = vmatpush1.xpose.msra.mxu0 0.0
    %517 = vmatprep.subr.mxu0 0.0
    %518 = vmatpush1.xpose.msra.mxu0 0.0
    %519 = vmatprep.subr.mxu0 0.0
    %520 = vmatpush1.xpose.msra.mxu0 0.0
    %521 = vmatprep.subr.mxu0 0.0
    %522 = vmatpush1.xpose.msra.mxu0 0.0
    %523 = vmatprep.subr.mxu0 0.0
    %524 = vmatpush1.xpose.msra.mxu0 0.0
    %525 = vmatprep.subr.mxu0 0.0
    %526 = vmatpush1.xpose.msra.mxu0 0.0
    %527 = vmatprep.subr.mxu0 0.0
    %528 = vmatpush1.xpose.msra.mxu0 0.0
    %529 = vmatprep.subr.mxu0 0.0
    %530 = vmatpush1.xpose.msra.mxu0 0.0
    %531 = vmatprep.subr.mxu0 0.0
    %532 = vmatpush1.xpose.msra.mxu0 0.0
    %533 = vmatprep.subr.mxu0 0.0
    %534 = vmatpush1.xpose.msra.mxu0 0.0
    %535 = vmatprep.subr.mxu0 0.0
    %536 = vmatpush1.xpose.msra.mxu0 0.0
    %537 = vmatprep.subr.mxu0 0.0
    %538 = vmatpush1.xpose.msra.mxu0 0.0
    %539 = vmatprep.subr.mxu0 0.0
    %540 = vmatpush1.xpose.msra.mxu0 0.0
    %541 = vmatprep.subr.mxu0 0.0
    %542 = vmatpush1.xpose.msra.mxu0 0.0
    %543 = vmatprep.subr.mxu0 0.0
    %544 = vmatpush1.xpose.msra.mxu0 0.0
    %545 = vmatprep.subr.mxu0 0.0
    %546 = vmatpush1.xpose.msra.mxu0 0.0
    %547 = vmatprep.subr.mxu0 0.0
    %548 = vmatpush1.xpose.msra.mxu0 0.0
    %549 = vmatprep.subr.mxu0 0.0
    %550 = vmatpush1.xpose.msra.mxu0 0.0
    %551 = vmatprep.subr.mxu0 0.0
    %552 = vmatpush1.xpose.msra.mxu0 0.0
    %553 = vmatprep.subr.mxu0 0.0
    %554 = vmatpush1.xpose.msra.mxu0 0.0
    %555 = vmatprep.subr.mxu0 0.0
    %556 = vmatpush1.xpose.msra.mxu0 0.0
    %557 = vmatprep.subr.mxu0 0.0
    %558 = vmatpush1.xpose.msra.mxu0 0.0
    %559 = vmatprep.subr.mxu0 0.0
    %560 = vmatpush1.xpose.msra.mxu0 0.0
    %561 = vmatprep.subr.mxu0 0.0
    %562 = vmatpush1.xpose.msra.mxu0 0.0
    %563 = vmatprep.subr.mxu0 0.0
    %564 = vmatpush1.xpose.msra.mxu0 0.0
    %565 = vmatprep.subr.mxu0 0.0
    %566 = vmatpush1.xpose.msra.mxu0 0.0
    %567 = vmatprep.mubr.f32.mxu0 %v500
    %568 = vmatmul.mubr.f32.gmra.mrb[0].mxu0 %v496
    %v569 = vpop.f32.mrb[0].mxu0
    %v570 = vadd.f32 %v491, %v569
    %v571 = vpop.f32.mrb[0].mxu0
    %572 = vdwg.mxu0
    %vm573 = vcmask 57344
    %574 = vst.msk [vmem:[#allocation6] sm:$0x1] %vm573, %v570
    // Predicated region
    $region50: #{maple_critic_forward.1} parent=1 // pred_check
      _
    $region51: #{maple_critic_forward.1} parent=1 // pred_check_branch
      %576 = sbr.rel (0) target = $region53
    $region52: #{maple_critic_forward.1} parent=1 // pred_region
      %s578 = ssub.s32 16, 16
      %579 = vsyncadd [#allocation5], %s578
      %s581 = sshll.u32 [#allocation6], 4
      %s582 = int_to_ptr.vmem [resolvable:$true] %s581
      %584 = dma.vmem_to_hbm [thread:$0]  %s582, 16, %s11, [#allocation5]
    $region53: #{maple_critic_forward.1} parent=1 // pred_fallthru
      _
    // Predicated region
    $region54: #{maple_critic_forward.1} parent=1 // pred_check
      _
    $region55: #{maple_critic_forward.1} parent=1 // pred_check_branch
      %586 = sbr.rel (0) target = $region57
    $region56: #{maple_critic_forward.1} parent=1 // pred_region
      %587 = dma.done [#allocation5], 16
    $region57: #{maple_critic_forward.1} parent=1 // pred_fallthru
      _
    %588 = vsyncpa [#allocation4], 1
    %589 = vsyncpa [#allocation5], 1

</llo_original>
